<compile_context>
chip_gen: v6e
topology: v6e:2x2x1
jax: 0.10.0
libtpu: 0.0.40
codegen_flags: <defaults>
</compile_context>

<pallas_src>
import functools
import math

import jax
import jax.numpy as jnp
from jax.experimental import pallas as pl
from jax.experimental.pallas import tpu as pltpu


def _encoder_block_kernel(x_ref,
                          wqkv_ref, bqkv_ref,
                          wo_ref, bo_ref,
                          gamma_ref, beta_ref,
                          w1_ref, b1_ref, w2_ref, b2_ref,
                          out_ref,
                          *, n_heads, key_dim, value_dim, eps):
    H, Dk, Dv = n_heads, key_dim, value_dim
    BT, S, E = x_ref.shape                     # batch-tile, seq, embed
    R = BT * S
    f32, bf16 = jnp.float32, jnp.bfloat16

    x = x_ref[...].reshape(R, E)               # (R, E) f32 — kept for residuals
    xb = x.astype(bf16)

    # ---- fused Q/K/V projection: one big MXU matmul ----------------------
    # Wqkv columns are [Q heads | K heads | V heads]; 1/sqrt(Dk) is already
    # folded into the Q columns (done once in prepare_params).
    qkv = jnp.dot(xb, wqkv_ref[...], preferred_element_type=f32) + bqkv_ref[...]
    nq = H * Dk

    def split_heads(cols, d):
        # (R, H*d) -> (H*BT, S, d): static per-head lane slices stacked on a
        # new leading batch axis (no 4-D transpose inside the kernel).
        parts = [cols[:, h * d:(h + 1) * d] for h in range(H)]
        t = jnp.stack(parts, axis=0)                      # (H, R, d)
        return t.reshape(H * BT, S, d).astype(bf16)

    q = split_heads(qkv[:, :nq], Dk)
    k = split_heads(qkv[:, nq:2 * nq], Dk)
    v = split_heads(qkv[:, 2 * nq:], Dv)

    # ---- scaled dot-product attention, batched over (head, batch-tile) ---
    s = jnp.einsum('bqd,bkd->bqk', q, k, preferred_element_type=f32)
    s = s - jnp.max(s, axis=-1, keepdims=True)
    p = jnp.exp(s)
    # EUP approximate reciprocal instead of a VALU divide.
    p = p * pl.reciprocal(jnp.sum(p, axis=-1, keepdims=True), approx=True)
    o = jnp.einsum('bqk,bkd->bqd', p.astype(bf16), v,
                   preferred_element_type=f32)            # (H*BT, S, Dv)

    # ---- merge heads (lane concat) + single packed output projection -----
    o = o.astype(bf16).reshape(H, R, Dv)
    o_merged = jnp.concatenate([o[h] for h in range(H)], axis=-1)   # (R, H*Dv)
    attn = jnp.dot(o_merged, wo_ref[...],
                   preferred_element_type=f32) + bo_ref[...]        # (R, E)

    # ---- shared LayerNorm (same params used twice, like the nn.Module) ---
    gamma = gamma_ref[...]          # (1, E) — read once, reused by both LNs
    beta = beta_ref[...]            # (1, E)

    def layer_norm(y):
        mu = jnp.mean(y, axis=-1, keepdims=True)
        var = jnp.mean(jnp.square(y - mu), axis=-1, keepdims=True)  # biased (torch)
        return (y - mu) * jax.lax.rsqrt(var + eps) * gamma + beta

    a = layer_norm(attn + x)                                        # (R, E)

    # ---- position-wise feed-forward (bf16 MXU operands, f32 accumulation)
    h1 = jnp.dot(a.astype(bf16), w1_ref[...],
                 preferred_element_type=f32) + b1_ref[...]
    h1 = jnp.maximum(h1, 0.0)                                       # ReLU
    h2 = jnp.dot(h1.astype(bf16), w2_ref[...],
                 preferred_element_type=f32) + b2_ref[...]

    out_ref[...] = layer_norm(a + h2).reshape(BT, S, E).astype(out_ref.dtype)


def prepare_params(params, *, n_heads, key_dim, value_dim):
    """One-time weight packing / bf16 cast. Call once, reuse every forward."""
    H, Dk, Dv = n_heads, key_dim, value_dim
    E = params["wq"].shape[1]
    bf16, f32 = jnp.bfloat16, jnp.float32
    inv = 1.0 / math.sqrt(Dk)                 # fold score scale into Q proj

    def pack_w(w):                            # (H, E, D) -> (E, H*D)
        return jnp.transpose(w, (1, 0, 2)).reshape(E, -1)

    wqkv = jnp.concatenate([pack_w(params["wq"]) * inv,
                            pack_w(params["wk"]),
                            pack_w(params["wv"])], axis=1).astype(bf16)
    bqkv = jnp.concatenate([params["bq"].reshape(1, -1) * inv,
                            params["bk"].reshape(1, -1),
                            params["bv"].reshape(1, -1)], axis=1).astype(f32)
    return {
        "wqkv": wqkv, "bqkv": bqkv,
        "wo": params["wo"].reshape(H * Dv, E).astype(bf16),   # (H*Dv, E)
        "bo": params["bo"].astype(f32),
        "gamma": params["gamma"].astype(f32),
        "beta": params["beta"].astype(f32),
        "w1": params["w1"].astype(bf16), "b1": params["b1"].astype(f32),
        "w2": params["w2"].astype(bf16), "b2": params["b2"].astype(f32),
    }


def _pick_batch_tile(B, S, target_rows=256):
    """Largest whole-sequence batch tile with <= target rows, preferring >=2
    grid steps (megacore / pipelining)."""
    candidates = [bt for bt in range(1, B + 1)
                  if B % bt == 0 and bt * S <= target_rows]
    if not candidates:
        return 1
    multi = [bt for bt in candidates if B // bt >= 2]
    return max(multi) if multi else max(candidates)


def encoder_block(x, prepared, *, n_heads, key_dim, value_dim):
    """x: (B, S, E) float32. prepared: output of prepare_params."""
    B, S, E = x.shape
    H, Dk, Dv = n_heads, key_dim, value_dim
    F = prepared["w1"].shape[1]
    nqkv = prepared["wqkv"].shape[1]
    BT = _pick_batch_tile(B, S)
    grid = (B // BT,)

    def const_spec(arr):
        n = arr.ndim
        return pl.BlockSpec(arr.shape, lambda i, _n=n: (0,) * _n)

    kernel = functools.partial(_encoder_block_kernel, n_heads=H,
                               key_dim=Dk, value_dim=Dv, eps=1e-5)

    weight_args = (prepared["wqkv"], prepared["bqkv"], prepared["wo"],
                   prepared["bo"], prepared["gamma"], prepared["beta"],
                   prepared["w1"], prepared["b1"], prepared["w2"], prepared["b2"])

    weight_bytes = sum(int(a.size) * a.dtype.itemsize for a in weight_args)
    act_bytes = 2 * B * S * E * 4
    flops = (2 * B * S * E * nqkv                 # fused QKV projection
             + 2 * B * H * S * S * (Dk + Dv)      # scores + PV
             + 2 * B * S * (H * Dv) * E           # output projection
             + 4 * B * S * E * F)                 # FFN
    cost = pl.CostEstimate(flops=flops,
                           transcendentals=B * H * S * S + 2 * B * S,
                           bytes_accessed=act_bytes + weight_bytes)

    # Scoped-VMEM budget from the actual resident buffers (double-buffered) +
    # headroom, clamped to stay within every generation's physical VMEM.
    tile_bytes = 2 * BT * S * E * 4
    vmem_est = 2 * (weight_bytes + tile_bytes)
    vmem_limit = int(min(max(vmem_est + (8 << 20), 32 << 20), 48 << 20))

    x_spec = pl.BlockSpec((BT, S, E), lambda i: (i, 0, 0))
    out_spec = pl.BlockSpec((BT, S, E), lambda i: (i, 0, 0))

    return pl.pallas_call(
        kernel,
        out_shape=jax.ShapeDtypeStruct((B, S, E), x.dtype),
        grid_spec=pltpu.PrefetchScalarGridSpec(
            num_scalar_prefetch=0,
            grid=grid,
            in_specs=[x_spec] + [const_spec(a) for a in weight_args],
            out_specs=out_spec,
        ),
        compiler_params=pltpu.CompilerParams(
            dimension_semantics=("parallel",),
            vmem_limit_bytes=vmem_limit),
        cost_estimate=cost,
    )(x, *weight_args)


def init_params(key, *, n_heads, embed_dim, key_dim, value_dim, ff_dim):
    H, E, Dk, Dv, F = n_heads, embed_dim, key_dim, value_dim, ff_dim
    keys = jax.random.split(key, 12)
    scale = 0.05
    return {
        "wq": scale * jax.random.normal(keys[0], (H, E, Dk), jnp.float32),
        "bq": scale * jax.random.normal(keys[1], (H, 1, Dk), jnp.float32),
        "wk": scale * jax.random.normal(keys[2], (H, E, Dk), jnp.float32),
        "bk": scale * jax.random.normal(keys[3], (H, 1, Dk), jnp.float32),
        "wv": scale * jax.random.normal(keys[4], (H, E, Dv), jnp.float32),
        "bv": scale * jax.random.normal(keys[5], (H, 1, Dv), jnp.float32),
        "wo": scale * jax.random.normal(keys[6], (H, Dv, E), jnp.float32),
        "bo": scale * jax.random.normal(keys[7], (1, E), jnp.float32),
        "gamma": jnp.ones((1, E), jnp.float32),
        "beta": jnp.zeros((1, E), jnp.float32),
        "w1": scale * jax.random.normal(keys[8], (E, F), jnp.float32),
        "b1": scale * jax.random.normal(keys[9], (1, F), jnp.float32),
        "w2": scale * jax.random.normal(keys[10], (F, E), jnp.float32),
        "b2": scale * jax.random.normal(keys[11], (1, E), jnp.float32),
    }


def encoder_block_ref(x, p, *, n_heads, key_dim, value_dim):
    """Pure-JAX fp32 reference (PyTorch-equivalent math)."""
    def ln(y):
        mu = jnp.mean(y, axis=-1, keepdims=True)
        var = jnp.mean((y - mu) ** 2, axis=-1, keepdims=True)
        return (y - mu) / jnp.sqrt(var + 1e-5) * p["gamma"][0] + p["beta"][0]

    q = jnp.einsum("bse,hed->bhsd", x, p["wq"]) + p["bq"][None]
    k = jnp.einsum("bse,hed->bhsd", x, p["wk"]) + p["bk"][None]
    v = jnp.einsum("bse,hed->bhsd", x, p["wv"]) + p["bv"][None]
    s = jnp.einsum("bhqd,bhkd->bhqk", q, k) / math.sqrt(key_dim)
    pr = jax.nn.softmax(s, axis=-1)
    o = jnp.einsum("bhqk,bhkd->bhqd", pr, v)
    attn = jnp.einsum("bhsd,hde->bse", o, p["wo"]) + p["bo"][0]
    a = ln(attn + x)
    h = jax.nn.relu(a @ p["w1"] + p["b1"][0])
    h = h @ p["w2"] + p["b2"][0]
    return ln(a + h)


if __name__ == "__main__":
    # Small shapes consistent with the module's forward.
    B, S = 2, 8
    n_heads, embed_dim, key_dim, value_dim, ff_dim = 2, 32, 16, 16, 64

    root = jax.random.PRNGKey(0)
    kx, kp = jax.random.split(root)
    x = jax.random.normal(kx, (B, S, embed_dim), jnp.float32)
    params = init_params(kp, n_heads=n_heads, embed_dim=embed_dim,
                         key_dim=key_dim, value_dim=value_dim, ff_dim=ff_dim)

    prepared = prepare_params(params, n_heads=n_heads,
                              key_dim=key_dim, value_dim=value_dim)  # one-time

    out = encoder_block(x, prepared, n_heads=n_heads,
                        key_dim=key_dim, value_dim=value_dim)
    out = jax.block_until_ready(out)

    ref = encoder_block_ref(x, params, n_heads=n_heads,
                            key_dim=key_dim, value_dim=value_dim)
    assert out.shape == (B, S, embed_dim)
    # Tolerance loosened vs. the fp32 reference: MXU operands are bf16
    # (f32 accumulation) and the softmax uses an approximate EUP reciprocal.
    assert jnp.allclose(out, ref, atol=3e-2, rtol=3e-2), "mismatch vs reference"

    print("KERNEL_OK")
</pallas_src>

<mosaic_0001>
module attributes {stable_mosaic.version = 11 : i64} {
  func.func @_encoder_block_kernel(%arg0: i32, %arg1: memref<1x8x32xf32, #tpu.memory_space<vmem>>, %arg2: memref<32x96xbf16, #tpu.memory_space<vmem>>, %arg3: memref<1x96xf32, #tpu.memory_space<vmem>>, %arg4: memref<32x32xbf16, #tpu.memory_space<vmem>>, %arg5: memref<1x32xf32, #tpu.memory_space<vmem>>, %arg6: memref<1x32xf32, #tpu.memory_space<vmem>>, %arg7: memref<1x32xf32, #tpu.memory_space<vmem>>, %arg8: memref<32x64xbf16, #tpu.memory_space<vmem>>, %arg9: memref<1x64xf32, #tpu.memory_space<vmem>>, %arg10: memref<64x32xbf16, #tpu.memory_space<vmem>>, %arg11: memref<1x32xf32, #tpu.memory_space<vmem>>, %arg12: memref<1x8x32xf32, #tpu.memory_space<vmem>>) attributes {dimension_semantics = [#tpu.dimension_semantics<parallel>], iteration_bounds = array<i64: 2>, scalar_prefetch = 0 : i64, scratch_operands = 0 : i64, tpu.core_type = #tpu.core_type<tc>, window_params = [{transform_indices = @transform_0, window_bounds = array<i64: 1, 8, 32>}, {pipeline_mode = #tpu.pipeline_mode<synchronous>, transform_indices = @transform_1, window_bounds = array<i64: 32, 96>}, {pipeline_mode = #tpu.pipeline_mode<synchronous>, transform_indices = @transform_2, window_bounds = array<i64: 1, 96>}, {pipeline_mode = #tpu.pipeline_mode<synchronous>, transform_indices = @transform_3, window_bounds = array<i64: 32, 32>}, {pipeline_mode = #tpu.pipeline_mode<synchronous>, transform_indices = @transform_4, window_bounds = array<i64: 1, 32>}, {pipeline_mode = #tpu.pipeline_mode<synchronous>, transform_indices = @transform_5, window_bounds = array<i64: 1, 32>}, {pipeline_mode = #tpu.pipeline_mode<synchronous>, transform_indices = @transform_6, window_bounds = array<i64: 1, 32>}, {pipeline_mode = #tpu.pipeline_mode<synchronous>, transform_indices = @transform_7, window_bounds = array<i64: 32, 64>}, {pipeline_mode = #tpu.pipeline_mode<synchronous>, transform_indices = @transform_8, window_bounds = array<i64: 1, 64>}, {pipeline_mode = #tpu.pipeline_mode<synchronous>, transform_indices = @transform_9, window_bounds = array<i64: 64, 32>}, {pipeline_mode = #tpu.pipeline_mode<synchronous>, transform_indices = @transform_10, window_bounds = array<i64: 1, 32>}, {transform_indices = @transform_11, window_bounds = array<i64: 1, 8, 32>}]} {
    %c0 = arith.constant 0 : index
    %c0_0 = arith.constant 0 : index
    %c0_1 = arith.constant 0 : index
    %0 = vector.load %arg1[%c0, %c0_0, %c0_1] : memref<1x8x32xf32, #tpu.memory_space<vmem>>, vector<1x8x32xf32>
    %1 = vector.shape_cast %0 : vector<1x8x32xf32> to vector<8x32xf32>
    %2 = arith.truncf %1 : vector<8x32xf32> to vector<8x32xbf16>
    %c0_2 = arith.constant 0 : index
    %c0_3 = arith.constant 0 : index
    %3 = vector.load %arg2[%c0_2, %c0_3] : memref<32x96xbf16, #tpu.memory_space<vmem>>, vector<32x96xbf16>
    %cst = arith.constant dense<0.000000e+00> : vector<8x96xf32>
    %4 = tpu.matmul %2, %3, %cst {dimension_numbers = #tpu.dot_dimension_numbers<[1], [0], [0], [1], [0, 0, 1, 1], [], []>} : vector<8x32xbf16>, vector<32x96xbf16>, vector<8x96xf32> -> vector<8x96xf32>
    %c0_4 = arith.constant 0 : index
    %c0_5 = arith.constant 0 : index
    %5 = vector.load %arg3[%c0_4, %c0_5] : memref<1x96xf32, #tpu.memory_space<vmem>>, vector<1x96xf32>
    %6 = vector.broadcast %5 : vector<1x96xf32> to vector<8x96xf32>
    %7 = arith.addf %4, %6 : vector<8x96xf32>
    %8 = vector.extract_strided_slice %7 {offsets = [0, 0], sizes = [8, 32], strides = [1, 1]} : vector<8x96xf32> to vector<8x32xf32>
    %9 = vector.extract_strided_slice %8 {offsets = [0, 0], sizes = [8, 16], strides = [1, 1]} : vector<8x32xf32> to vector<8x16xf32>
    %10 = vector.extract_strided_slice %8 {offsets = [0, 16], sizes = [8, 16], strides = [1, 1]} : vector<8x32xf32> to vector<8x16xf32>
    %11 = vector.shape_cast %9 : vector<8x16xf32> to vector<1x8x16xf32>
    %12 = vector.shape_cast %10 : vector<8x16xf32> to vector<1x8x16xf32>
    %13 = tpu.concatenate %11, %12 in 0 : vector<1x8x16xf32>, vector<1x8x16xf32> -> vector<2x8x16xf32>
    %14 = arith.truncf %13 : vector<2x8x16xf32> to vector<2x8x16xbf16>
    %15 = vector.extract_strided_slice %7 {offsets = [0, 32], sizes = [8, 32], strides = [1, 1]} : vector<8x96xf32> to vector<8x32xf32>
    %16 = vector.extract_strided_slice %15 {offsets = [0, 0], sizes = [8, 16], strides = [1, 1]} : vector<8x32xf32> to vector<8x16xf32>
    %17 = vector.extract_strided_slice %15 {offsets = [0, 16], sizes = [8, 16], strides = [1, 1]} : vector<8x32xf32> to vector<8x16xf32>
    %18 = vector.shape_cast %16 : vector<8x16xf32> to vector<1x8x16xf32>
    %19 = vector.shape_cast %17 : vector<8x16xf32> to vector<1x8x16xf32>
    %20 = tpu.concatenate %18, %19 in 0 : vector<1x8x16xf32>, vector<1x8x16xf32> -> vector<2x8x16xf32>
    %21 = arith.truncf %20 : vector<2x8x16xf32> to vector<2x8x16xbf16>
    %22 = vector.extract_strided_slice %7 {offsets = [0, 64], sizes = [8, 32], strides = [1, 1]} : vector<8x96xf32> to vector<8x32xf32>
    %23 = vector.extract_strided_slice %22 {offsets = [0, 0], sizes = [8, 16], strides = [1, 1]} : vector<8x32xf32> to vector<8x16xf32>
    %24 = vector.extract_strided_slice %22 {offsets = [0, 16], sizes = [8, 16], strides = [1, 1]} : vector<8x32xf32> to vector<8x16xf32>
    %25 = vector.shape_cast %23 : vector<8x16xf32> to vector<1x8x16xf32>
    %26 = vector.shape_cast %24 : vector<8x16xf32> to vector<1x8x16xf32>
    %27 = tpu.concatenate %25, %26 in 0 : vector<1x8x16xf32>, vector<1x8x16xf32> -> vector<2x8x16xf32>
    %28 = arith.truncf %27 : vector<2x8x16xf32> to vector<2x8x16xbf16>
    "tpu.trace_start"() <{level = 10 : i32, message = "bqd,bkd->bqk"}> : () -> ()
    %cst_6 = arith.constant dense<0.000000e+00> : vector<2x8x8xf32>
    %29 = tpu.matmul %14, %21, %cst_6 {dimension_numbers = #tpu.dot_dimension_numbers<[2], [2], [1], [1], [0, 0, 0, 1, 1, 1], [0], [0]>} : vector<2x8x16xbf16>, vector<2x8x16xbf16>, vector<2x8x8xf32> -> vector<2x8x8xf32>
    "tpu.trace_stop"() : () -> ()
    %cst_7 = arith.constant dense<0xFF800000> : vector<2x8xf32>
    %30 = vector.multi_reduction <maximumf>, %29, %cst_7 [2] : vector<2x8x8xf32> to vector<2x8xf32>
    %31 = vector.shape_cast %30 : vector<2x8xf32> to vector<2x8x1xf32>
    %32 = vector.broadcast %31 : vector<2x8x1xf32> to vector<2x8x8xf32>
    %33 = arith.subf %29, %32 : vector<2x8x8xf32>
    %34 = math.exp %33 : vector<2x8x8xf32>
    %cst_8 = arith.constant dense<0.000000e+00> : vector<2x8xf32>
    %35 = vector.multi_reduction <add>, %34, %cst_8 [2] : vector<2x8x8xf32> to vector<2x8xf32>
    %36 = vector.shape_cast %35 : vector<2x8xf32> to vector<2x8x1xf32>
    %37 = tpu.reciprocal %36 {approx = true} : vector<2x8x1xf32> -> vector<2x8x1xf32>
    %38 = vector.broadcast %37 : vector<2x8x1xf32> to vector<2x8x8xf32>
    %39 = arith.mulf %34, %38 : vector<2x8x8xf32>
    %40 = arith.truncf %39 : vector<2x8x8xf32> to vector<2x8x8xbf16>
    "tpu.trace_start"() <{level = 10 : i32, message = "bqk,bkd->bqd"}> : () -> ()
    %cst_9 = arith.constant dense<0.000000e+00> : vector<2x8x16xf32>
    %41 = tpu.matmul %40, %28, %cst_9 {dimension_numbers = #tpu.dot_dimension_numbers<[2], [1], [1], [2], [0, 0, 0, 1, 1, 2], [0], [0]>} : vector<2x8x8xbf16>, vector<2x8x16xbf16>, vector<2x8x16xf32> -> vector<2x8x16xf32>
    "tpu.trace_stop"() : () -> ()
    %42 = arith.truncf %41 : vector<2x8x16xf32> to vector<2x8x16xbf16>
    %43 = vector.extract_strided_slice %42 {offsets = [0, 0, 0], sizes = [1, 8, 16], strides = [1, 1, 1]} : vector<2x8x16xbf16> to vector<1x8x16xbf16>
    %44 = vector.shape_cast %43 : vector<1x8x16xbf16> to vector<8x16xbf16>
    %45 = vector.extract_strided_slice %42 {offsets = [1, 0, 0], sizes = [1, 8, 16], strides = [1, 1, 1]} : vector<2x8x16xbf16> to vector<1x8x16xbf16>
    %46 = vector.shape_cast %45 : vector<1x8x16xbf16> to vector<8x16xbf16>
    %47 = tpu.concatenate %44, %46 in 1 : vector<8x16xbf16>, vector<8x16xbf16> -> vector<8x32xbf16>
    %c0_10 = arith.constant 0 : index
    %c0_11 = arith.constant 0 : index
    %48 = vector.load %arg4[%c0_10, %c0_11] : memref<32x32xbf16, #tpu.memory_space<vmem>>, vector<32x32xbf16>
    %cst_12 = arith.constant dense<0.000000e+00> : vector<8x32xf32>
    %49 = tpu.matmul %47, %48, %cst_12 {dimension_numbers = #tpu.dot_dimension_numbers<[1], [0], [0], [1], [0, 0, 1, 1], [], []>} : vector<8x32xbf16>, vector<32x32xbf16>, vector<8x32xf32> -> vector<8x32xf32>
    %c0_13 = arith.constant 0 : index
    %c0_14 = arith.constant 0 : index
    %50 = vector.load %arg5[%c0_13, %c0_14] : memref<1x32xf32, #tpu.memory_space<vmem>>, vector<1x32xf32>
    %51 = vector.broadcast %50 : vector<1x32xf32> to vector<8x32xf32>
    %52 = arith.addf %49, %51 : vector<8x32xf32>
    %c0_15 = arith.constant 0 : index
    %c0_16 = arith.constant 0 : index
    %53 = vector.load %arg6[%c0_15, %c0_16] : memref<1x32xf32, #tpu.memory_space<vmem>>, vector<1x32xf32>
    %c0_17 = arith.constant 0 : index
    %c0_18 = arith.constant 0 : index
    %54 = vector.load %arg7[%c0_17, %c0_18] : memref<1x32xf32, #tpu.memory_space<vmem>>, vector<1x32xf32>
    %55 = arith.addf %52, %1 : vector<8x32xf32>
    %cst_19 = arith.constant dense<0.000000e+00> : vector<8xf32>
    %56 = vector.multi_reduction <add>, %55, %cst_19 [1] : vector<8x32xf32> to vector<8xf32>
    %57 = vector.shape_cast %56 : vector<8xf32> to vector<8x1xf32>
    %cst_20 = arith.constant 3.200000e+01 : f32
    %58 = vector.broadcast %cst_20 : f32 to vector<8x1xf32>
    %59 = arith.divf %57, %58 : vector<8x1xf32>
    %60 = vector.broadcast %59 : vector<8x1xf32> to vector<8x32xf32>
    %61 = arith.subf %55, %60 : vector<8x32xf32>
    %62 = arith.mulf %61, %61 : vector<8x32xf32>
    %cst_21 = arith.constant dense<0.000000e+00> : vector<8xf32>
    %63 = vector.multi_reduction <add>, %62, %cst_21 [1] : vector<8x32xf32> to vector<8xf32>
    %64 = vector.shape_cast %63 : vector<8xf32> to vector<8x1xf32>
    %cst_22 = arith.constant 3.200000e+01 : f32
    %65 = vector.broadcast %cst_22 : f32 to vector<8x1xf32>
    %66 = arith.divf %64, %65 : vector<8x1xf32>
    %67 = vector.broadcast %59 : vector<8x1xf32> to vector<8x32xf32>
    %68 = arith.subf %55, %67 : vector<8x32xf32>
    %cst_23 = arith.constant 9.99999974E-6 : f32
    %69 = vector.broadcast %cst_23 : f32 to vector<8x1xf32>
    %70 = arith.addf %66, %69 : vector<8x1xf32>
    %71 = math.rsqrt %70 : vector<8x1xf32>
    %72 = vector.broadcast %71 : vector<8x1xf32> to vector<8x32xf32>
    %73 = arith.mulf %68, %72 : vector<8x32xf32>
    %74 = vector.broadcast %53 : vector<1x32xf32> to vector<8x32xf32>
    %75 = arith.mulf %73, %74 : vector<8x32xf32>
    %76 = vector.broadcast %54 : vector<1x32xf32> to vector<8x32xf32>
    %77 = arith.addf %75, %76 : vector<8x32xf32>
    %78 = arith.truncf %77 : vector<8x32xf32> to vector<8x32xbf16>
    %c0_24 = arith.constant 0 : index
    %c0_25 = arith.constant 0 : index
    %79 = vector.load %arg8[%c0_24, %c0_25] : memref<32x64xbf16, #tpu.memory_space<vmem>>, vector<32x64xbf16>
    %cst_26 = arith.constant dense<0.000000e+00> : vector<8x64xf32>
    %80 = tpu.matmul %78, %79, %cst_26 {dimension_numbers = #tpu.dot_dimension_numbers<[1], [0], [0], [1], [0, 0, 1, 1], [], []>} : vector<8x32xbf16>, vector<32x64xbf16>, vector<8x64xf32> -> vector<8x64xf32>
    %c0_27 = arith.constant 0 : index
    %c0_28 = arith.constant 0 : index
    %81 = vector.load %arg9[%c0_27, %c0_28] : memref<1x64xf32, #tpu.memory_space<vmem>>, vector<1x64xf32>
    %82 = vector.broadcast %81 : vector<1x64xf32> to vector<8x64xf32>
    %83 = arith.addf %80, %82 : vector<8x64xf32>
    %cst_29 = arith.constant 0.000000e+00 : f32
    %84 = vector.broadcast %cst_29 : f32 to vector<8x64xf32>
    %85 = arith.maximumf %83, %84 : vector<8x64xf32>
    %86 = arith.truncf %85 : vector<8x64xf32> to vector<8x64xbf16>
    %c0_30 = arith.constant 0 : index
    %c0_31 = arith.constant 0 : index
    %87 = vector.load %arg10[%c0_30, %c0_31] : memref<64x32xbf16, #tpu.memory_space<vmem>>, vector<64x32xbf16>
    %cst_32 = arith.constant dense<0.000000e+00> : vector<8x32xf32>
    %88 = tpu.matmul %86, %87, %cst_32 {dimension_numbers = #tpu.dot_dimension_numbers<[1], [0], [0], [1], [0, 0, 1, 1], [], []>} : vector<8x64xbf16>, vector<64x32xbf16>, vector<8x32xf32> -> vector<8x32xf32>
    %c0_33 = arith.constant 0 : index
    %c0_34 = arith.constant 0 : index
    %89 = vector.load %arg11[%c0_33, %c0_34] : memref<1x32xf32, #tpu.memory_space<vmem>>, vector<1x32xf32>
    %90 = vector.broadcast %89 : vector<1x32xf32> to vector<8x32xf32>
    %91 = arith.addf %88, %90 : vector<8x32xf32>
    %92 = arith.addf %77, %91 : vector<8x32xf32>
    %cst_35 = arith.constant dense<0.000000e+00> : vector<8xf32>
    %93 = vector.multi_reduction <add>, %92, %cst_35 [1] : vector<8x32xf32> to vector<8xf32>
    %94 = vector.shape_cast %93 : vector<8xf32> to vector<8x1xf32>
    %cst_36 = arith.constant 3.200000e+01 : f32
    %95 = vector.broadcast %cst_36 : f32 to vector<8x1xf32>
    %96 = arith.divf %94, %95 : vector<8x1xf32>
    %97 = vector.broadcast %96 : vector<8x1xf32> to vector<8x32xf32>
    %98 = arith.subf %92, %97 : vector<8x32xf32>
    %99 = arith.mulf %98, %98 : vector<8x32xf32>
    %cst_37 = arith.constant dense<0.000000e+00> : vector<8xf32>
    %100 = vector.multi_reduction <add>, %99, %cst_37 [1] : vector<8x32xf32> to vector<8xf32>
    %101 = vector.shape_cast %100 : vector<8xf32> to vector<8x1xf32>
    %cst_38 = arith.constant 3.200000e+01 : f32
    %102 = vector.broadcast %cst_38 : f32 to vector<8x1xf32>
    %103 = arith.divf %101, %102 : vector<8x1xf32>
    %104 = vector.broadcast %96 : vector<8x1xf32> to vector<8x32xf32>
    %105 = arith.subf %92, %104 : vector<8x32xf32>
    %cst_39 = arith.constant 9.99999974E-6 : f32
    %106 = vector.broadcast %cst_39 : f32 to vector<8x1xf32>
    %107 = arith.addf %103, %106 : vector<8x1xf32>
    %108 = math.rsqrt %107 : vector<8x1xf32>
    %109 = vector.broadcast %108 : vector<8x1xf32> to vector<8x32xf32>
    %110 = arith.mulf %105, %109 : vector<8x32xf32>
    %111 = vector.broadcast %53 : vector<1x32xf32> to vector<8x32xf32>
    %112 = arith.mulf %110, %111 : vector<8x32xf32>
    %113 = vector.broadcast %54 : vector<1x32xf32> to vector<8x32xf32>
    %114 = arith.addf %112, %113 : vector<8x32xf32>
    %115 = vector.shape_cast %114 : vector<8x32xf32> to vector<1x8x32xf32>
    %c0_40 = arith.constant 0 : index
    %c0_41 = arith.constant 0 : index
    %c0_42 = arith.constant 0 : index
    %116 = vector.load %arg12[%c0_40, %c0_41, %c0_42] : memref<1x8x32xf32, #tpu.memory_space<vmem>>, vector<1x8x32xf32>
    tpu.vector_store %arg12[%c0_40, %c0_41, %c0_42], %115 {strides = array<i32>} : memref<1x8x32xf32, #tpu.memory_space<vmem>>, vector<1x8x32xf32>,
    return
  }
  func.func @transform_0(%arg0: i32) -> (i32, i32, i32) {
    %c0_i32 = arith.constant 0 : i32
    %c0_i32_0 = arith.constant 0 : i32
    %c0_i32_1 = arith.constant 0 : i32
    return %arg0, %c0_i32, %c0_i32_0 : i32, i32, i32
  }
  func.func @transform_1(%arg0: i32) -> (i32, i32) {
    %c0_i32 = arith.constant 0 : i32
    %c0_i32_0 = arith.constant 0 : i32
    %c0_i32_1 = arith.constant 0 : i32
    return %c0_i32, %c0_i32_0 : i32, i32
  }
  func.func @transform_2(%arg0: i32) -> (i32, i32) {
    %c0_i32 = arith.constant 0 : i32
    %c0_i32_0 = arith.constant 0 : i32
    %c0_i32_1 = arith.constant 0 : i32
    return %c0_i32, %c0_i32_0 : i32, i32
  }
  func.func @transform_3(%arg0: i32) -> (i32, i32) {
    %c0_i32 = arith.constant 0 : i32
    %c0_i32_0 = arith.constant 0 : i32
    %c0_i32_1 = arith.constant 0 : i32
    return %c0_i32, %c0_i32_0 : i32, i32
  }
  func.func @transform_4(%arg0: i32) -> (i32, i32) {
    %c0_i32 = arith.constant 0 : i32
    %c0_i32_0 = arith.constant 0 : i32
    %c0_i32_1 = arith.constant 0 : i32
    return %c0_i32, %c0_i32_0 : i32, i32
  }
  func.func @transform_5(%arg0: i32) -> (i32, i32) {
    %c0_i32 = arith.constant 0 : i32
    %c0_i32_0 = arith.constant 0 : i32
    %c0_i32_1 = arith.constant 0 : i32
    return %c0_i32, %c0_i32_0 : i32, i32
  }
  func.func @transform_6(%arg0: i32) -> (i32, i32) {
    %c0_i32 = arith.constant 0 : i32
    %c0_i32_0 = arith.constant 0 : i32
    %c0_i32_1 = arith.constant 0 : i32
    return %c0_i32, %c0_i32_0 : i32, i32
  }
  func.func @transform_7(%arg0: i32) -> (i32, i32) {
    %c0_i32 = arith.constant 0 : i32
    %c0_i32_0 = arith.constant 0 : i32
    %c0_i32_1 = arith.constant 0 : i32
    return %c0_i32, %c0_i32_0 : i32, i32
  }
  func.func @transform_8(%arg0: i32) -> (i32, i32) {
    %c0_i32 = arith.constant 0 : i32
    %c0_i32_0 = arith.constant 0 : i32
    %c0_i32_1 = arith.constant 0 : i32
    return %c0_i32, %c0_i32_0 : i32, i32
  }
  func.func @transform_9(%arg0: i32) -> (i32, i32) {
    %c0_i32 = arith.constant 0 : i32
    %c0_i32_0 = arith.constant 0 : i32
    %c0_i32_1 = arith.constant 0 : i32
    return %c0_i32, %c0_i32_0 : i32, i32
  }
  func.func @transform_10(%arg0: i32) -> (i32, i32) {
    %c0_i32 = arith.constant 0 : i32
    %c0_i32_0 = arith.constant 0 : i32
    %c0_i32_1 = arith.constant 0 : i32
    return %c0_i32, %c0_i32_0 : i32, i32
  }
  func.func @transform_11(%arg0: i32) -> (i32, i32, i32) {
    %c0_i32 = arith.constant 0 : i32
    %c0_i32_0 = arith.constant 0 : i32
    %c0_i32_1 = arith.constant 0 : i32
    return %arg0, %c0_i32, %c0_i32_0 : i32, i32, i32
  }
}

</mosaic_0001>

<llo_original>
// kernel: tpu_custom_call.1
$region0: #{tpu_custom_call.1}
  #allocation0 [shape = 'u32[]', space=smem, size = 0x4, offset = 0x4, fixed_abs, tag = 'smem constant byte address 0x4 - core index']
  #allocation1 [shape = 'u32[144,128]{1,0:T(1,128)}', space=vmem, size = 0x12000, scoped, tag = 'internal scratch']
  %s0 = inlined_call_operand.vmem [shape: f32[2,8,32], index: 0, kind: input, shape index: {}]
  %s1 = inlined_call_operand.vmem [shape: bf16[32,96], index: 1, kind: input, shape index: {}]
  %s2 = inlined_call_operand.hbm [shape: f32[1,96], index: 2, kind: input, shape index: {}]
  %s3 = inlined_call_operand.vmem [shape: bf16[32,32], index: 3, kind: input, shape index: {}]
  %s4 = inlined_call_operand.hbm [shape: f32[1,32], index: 4, kind: input, shape index: {}]
  %s5 = inlined_call_operand.hbm [shape: f32[1,32], index: 5, kind: input, shape index: {}]
  %s6 = inlined_call_operand.hbm [shape: f32[1,32], index: 6, kind: input, shape index: {}]
  %s7 = inlined_call_operand.hbm [shape: bf16[32,64], index: 7, kind: input, shape index: {}]
  %s8 = inlined_call_operand.hbm [shape: f32[1,64], index: 8, kind: input, shape index: {}]
  %s9 = inlined_call_operand.vmem [shape: bf16[64,32], index: 9, kind: input, shape index: {}]
  %s10 = inlined_call_operand.vmem [shape: f32[1,32], index: 10, kind: input, shape index: {}]
  %s11 = inlined_call_operand.hbm [shape: f32[2,8,32], index: 11, kind: output, shape index: {}]
  %s12 = sld [smem:[#allocation0]]
  $region101: #{tpu_custom_call.1} parent=0
    _
  %s14 = ssub.s32 1, %s12
  %s15 = scalar_select 0, %s14, %s12
  $region1: #{tpu_custom_call.1} parent=0
    #allocation2 [shape = 'u8[512]{0}', space=vmem, size = 0x400, scoped, tag = 'input window, operand 2, single buffered']
    #allocation3 [shape = 's32[2]{0}', space=sflag, size = 0x8, scoped, tag = 'scoped memory for tpu_custom_call.1']
    #allocation4 [shape = 's32[2]{0}', space=sflag, size = 0x8, scoped, tag = 'scoped memory for tpu_custom_call.1']
    #allocation5 [shape = 'u8[512]{0}', space=vmem, size = 0x400, scoped, tag = 'input window, operand 4, single buffered']
    #allocation6 [shape = 's32[1]{0}', space=sflag, size = 0x4, scoped, tag = 'scoped memory for tpu_custom_call.1']
    #allocation7 [shape = 'u8[512]{0}', space=vmem, size = 0x400, scoped, tag = 'input window, operand 5, single buffered']
    #allocation8 [shape = 'u8[512]{0}', space=vmem, size = 0x400, scoped, tag = 'input window, operand 6, single buffered']
    #allocation9 [shape = 's32[1]{0}', space=sflag, size = 0x4, scoped, tag = 'scoped memory for tpu_custom_call.1']
    #allocation10 [shape = 'u8[8192]{0}', space=vmem, size = 0x2000, scoped, tag = 'input window, operand 7, single buffered']
    #allocation11 [shape = 'u8[512]{0}', space=vmem, size = 0x400, scoped, tag = 'input window, operand 8, single buffered']
    #allocation12 [shape = 's32[1]{0}', space=sflag, size = 0x4, scoped, tag = 'scoped memory for tpu_custom_call.1']
    #allocation13 [shape = 'u8[8192]{0}', space=vmem, size = 0x2000, scoped, tag = 'output window, operand 0']
    %16 = vsyncpa [#allocation3], 0
    %17 = vsyncpa [#allocation6], 0
    %18 = vsyncpa [#allocation9], 0
    %19 = vsyncpa [#allocation12], 0
    %20 = vsyncpa [#allocation4], 0
    %s21 = scalar_lea.sflag [#allocation4], 1
    %22 = vsyncpa %s21, 0
    loop: start=0, step=1, limit=4
    $region2: #{tpu_custom_call.1} parent=1 // loop_pre_header
      _
    $region3: #{tpu_custom_call.1} parent=1 // loop_header
      %s24 = sphi 0, %s28
      %p25 = scmp.ge.s32.totalorder %s24, 4
      %s34 = sphi 0, %s36
      %s37 = sphi 0, %s34
      %s38 = sphi 0, %s37
      %s54 = sphi 0, %s38
      %s58 = sphi 0, %s58
      %s60 = sphi 0, %s58
      %s61 = sphi 0, %s60
      %s75 = sphi 0, %s61
      %s79 = sphi 0, %s79
      %s81 = sphi 0, %s79
      %s82 = sphi 0, %s81
      %s96 = sphi 0, %s82
      %s100 = sphi 0, %s100
      %s102 = sphi 0, %s100
      %s103 = sphi 0, %s102
      %s117 = sphi 0, %s103
      %s121 = sphi 0, %s121
      %s123 = sphi 0, %s121
      %s124 = sphi 0, %s123
      %s138 = sphi 0, %s124
      %s142 = sphi 0, %s142
      %s144 = sphi 0, %s142
      %s145 = sphi 0, %s144
      %s159 = sphi 0, %s145
      %s163 = sphi 0, %s163
      %s165 = sphi 0, %s163
      %s166 = sphi 0, %s165
      %s180 = sphi 0, %s166
      %s184 = sphi 0, %s184
      %s186 = sphi 0, %s184
      %s187 = sphi 0, %s186
      %s201 = sphi 0, %s187
      %s205 = sphi 0, %s205
      %s207 = sphi 0, %s205
      %s208 = sphi 0, %s207
      %s222 = sphi 0, %s208
      %s226 = sphi 0, %s226
      %s228 = sphi 0, %s226
      %s229 = sphi 0, %s228
      %s243 = sphi 0, %s229
      %s247 = sphi 0, %s247
      %s249 = sphi 0, %s247
      %s250 = sphi 0, %s249
      %s264 = sphi 0, %s250
      %s270 = sphi 0, %s272
      %s273 = sphi 0, %s270
      %s274 = sphi 0, %s273
      %s290 = sphi 0, %s274
    $region4: #{tpu_custom_call.1} parent=1 // loop_header_branch
      %27 = sbr.rel (%p25) target = $region8
    $region5: #{tpu_custom_call.1} parent=1 // loop_body
      %s29 = ssub.s32 %s24, 1
      %s30 = ssub.s32 %s24, 2
      %s31 = sadd.s32 %s24, 1
      %s32 = ssub.s32 %s24, %s31
      %p33 = scmp.eq.s32.totalorder %s32, 0
      %s35 = sadd.s32 %s34, 1
      %s36 = scalar_select %p33, %s34, %s35
      %p39 = pneg %p33
      %p40 = scmp.eq.s32.totalorder %s24, 1
      %p41 = por %p39, %p40
      %p42 = scmp.ne.s32.totalorder %s34, %s37
      %p43 = scmp.eq.s32.totalorder %s24, 0
      %p44 = por %p42, %p43
      %p45 = scmp.ne.s32.totalorder %s34, %s37
      %p46 = scmp.eq.s32.totalorder %s29, 1
      %p47 = por %p45, %p46
      %p48 = scmp.ne.s32.totalorder %s37, %s38
      %p49 = scmp.eq.s32.totalorder %s29, 0
      %p50 = por %p48, %p49
      %p51 = scmp.ne.s32.totalorder %s37, %s38
      %p52 = scmp.eq.s32.totalorder %s30, 1
      %p53 = por %p51, %p52
      %p55 = scmp.ne.s32.totalorder %s38, %s54
      %p56 = scmp.eq.s32.totalorder %s30, 0
      %p57 = por %p55, %p56
      %s59 = sadd.s32 %s58, 1
      %p62 = scmp.eq.s32.totalorder %s24, 1
      %p63 = scmp.ne.s32.totalorder %s58, %s60
      %p64 = scmp.eq.s32.totalorder %s24, 0
      %p65 = por %p63, %p64
      %p66 = scmp.ne.s32.totalorder %s58, %s60
      %p67 = scmp.eq.s32.totalorder %s29, 1
      %p68 = por %p66, %p67
      %p69 = scmp.ne.s32.totalorder %s60, %s61
      %p70 = scmp.eq.s32.totalorder %s29, 0
      %p71 = por %p69, %p70
      %p72 = scmp.ne.s32.totalorder %s60, %s61
      %p73 = scmp.eq.s32.totalorder %s30, 1
      %p74 = por %p72, %p73
      %p76 = scmp.ne.s32.totalorder %s61, %s75
      %p77 = scmp.eq.s32.totalorder %s30, 0
      %p78 = por %p76, %p77
      %s80 = sadd.s32 %s79, 1
      %p83 = scmp.eq.s32.totalorder %s24, 1
      %p84 = scmp.ne.s32.totalorder %s79, %s81
      %p85 = scmp.eq.s32.totalorder %s24, 0
      %p86 = por %p84, %p85
      %p87 = scmp.ne.s32.totalorder %s79, %s81
      %p88 = scmp.eq.s32.totalorder %s29, 1
      %p89 = por %p87, %p88
      %p90 = scmp.ne.s32.totalorder %s81, %s82
      %p91 = scmp.eq.s32.totalorder %s29, 0
      %p92 = por %p90, %p91
      %p93 = scmp.ne.s32.totalorder %s81, %s82
      %p94 = scmp.eq.s32.totalorder %s30, 1
      %p95 = por %p93, %p94
      %p97 = scmp.ne.s32.totalorder %s82, %s96
      %p98 = scmp.eq.s32.totalorder %s30, 0
      %p99 = por %p97, %p98
      %s101 = sadd.s32 %s100, 1
      %p104 = scmp.eq.s32.totalorder %s24, 1
      %p105 = scmp.ne.s32.totalorder %s100, %s102
      %p106 = scmp.eq.s32.totalorder %s24, 0
      %p107 = por %p105, %p106
      %p108 = scmp.ne.s32.totalorder %s100, %s102
      %p109 = scmp.eq.s32.totalorder %s29, 1
      %p110 = por %p108, %p109
      %p111 = scmp.ne.s32.totalorder %s102, %s103
      %p112 = scmp.eq.s32.totalorder %s29, 0
      %p113 = por %p111, %p112
      %p114 = scmp.ne.s32.totalorder %s102, %s103
      %p115 = scmp.eq.s32.totalorder %s30, 1
      %p116 = por %p114, %p115
      %p118 = scmp.ne.s32.totalorder %s103, %s117
      %p119 = scmp.eq.s32.totalorder %s30, 0
      %p120 = por %p118, %p119
      %s122 = sadd.s32 %s121, 1
      %p125 = scmp.eq.s32.totalorder %s24, 1
      %p126 = scmp.ne.s32.totalorder %s121, %s123
      %p127 = scmp.eq.s32.totalorder %s24, 0
      %p128 = por %p126, %p127
      %p129 = scmp.ne.s32.totalorder %s121, %s123
      %p130 = scmp.eq.s32.totalorder %s29, 1
      %p131 = por %p129, %p130
      %p132 = scmp.ne.s32.totalorder %s123, %s124
      %p133 = scmp.eq.s32.totalorder %s29, 0
      %p134 = por %p132, %p133
      %p135 = scmp.ne.s32.totalorder %s123, %s124
      %p136 = scmp.eq.s32.totalorder %s30, 1
      %p137 = por %p135, %p136
      %p139 = scmp.ne.s32.totalorder %s124, %s138
      %p140 = scmp.eq.s32.totalorder %s30, 0
      %p141 = por %p139, %p140
      %s143 = sadd.s32 %s142, 1
      %p146 = scmp.eq.s32.totalorder %s24, 1
      %p147 = scmp.ne.s32.totalorder %s142, %s144
      %p148 = scmp.eq.s32.totalorder %s24, 0
      %p149 = por %p147, %p148
      %p150 = scmp.ne.s32.totalorder %s142, %s144
      %p151 = scmp.eq.s32.totalorder %s29, 1
      %p152 = por %p150, %p151
      %p153 = scmp.ne.s32.totalorder %s144, %s145
      %p154 = scmp.eq.s32.totalorder %s29, 0
      %p155 = por %p153, %p154
      %p156 = scmp.ne.s32.totalorder %s144, %s145
      %p157 = scmp.eq.s32.totalorder %s30, 1
      %p158 = por %p156, %p157
      %p160 = scmp.ne.s32.totalorder %s145, %s159
      %p161 = scmp.eq.s32.totalorder %s30, 0
      %p162 = por %p160, %p161
      %s164 = sadd.s32 %s163, 1
      %p167 = scmp.eq.s32.totalorder %s24, 1
      %p168 = scmp.ne.s32.totalorder %s163, %s165
      %p169 = scmp.eq.s32.totalorder %s24, 0
      %p170 = por %p168, %p169
      %p171 = scmp.ne.s32.totalorder %s163, %s165
      %p172 = scmp.eq.s32.totalorder %s29, 1
      %p173 = por %p171, %p172
      %p174 = scmp.ne.s32.totalorder %s165, %s166
      %p175 = scmp.eq.s32.totalorder %s29, 0
      %p176 = por %p174, %p175
      %p177 = scmp.ne.s32.totalorder %s165, %s166
      %p178 = scmp.eq.s32.totalorder %s30, 1
      %p179 = por %p177, %p178
      %p181 = scmp.ne.s32.totalorder %s166, %s180
      %p182 = scmp.eq.s32.totalorder %s30, 0
      %p183 = por %p181, %p182
      %s185 = sadd.s32 %s184, 1
      %p188 = scmp.eq.s32.totalorder %s24, 1
      %p189 = scmp.ne.s32.totalorder %s184, %s186
      %p190 = scmp.eq.s32.totalorder %s24, 0
      %p191 = por %p189, %p190
      %p192 = scmp.ne.s32.totalorder %s184, %s186
      %p193 = scmp.eq.s32.totalorder %s29, 1
      %p194 = por %p192, %p193
      %p195 = scmp.ne.s32.totalorder %s186, %s187
      %p196 = scmp.eq.s32.totalorder %s29, 0
      %p197 = por %p195, %p196
      %p198 = scmp.ne.s32.totalorder %s186, %s187
      %p199 = scmp.eq.s32.totalorder %s30, 1
      %p200 = por %p198, %p199
      %p202 = scmp.ne.s32.totalorder %s187, %s201
      %p203 = scmp.eq.s32.totalorder %s30, 0
      %p204 = por %p202, %p203
      %s206 = sadd.s32 %s205, 1
      %p209 = scmp.eq.s32.totalorder %s24, 1
      %p210 = scmp.ne.s32.totalorder %s205, %s207
      %p211 = scmp.eq.s32.totalorder %s24, 0
      %p212 = por %p210, %p211
      %p213 = scmp.ne.s32.totalorder %s205, %s207
      %p214 = scmp.eq.s32.totalorder %s29, 1
      %p215 = por %p213, %p214
      %p216 = scmp.ne.s32.totalorder %s207, %s208
      %p217 = scmp.eq.s32.totalorder %s29, 0
      %p218 = por %p216, %p217
      %p219 = scmp.ne.s32.totalorder %s207, %s208
      %p220 = scmp.eq.s32.totalorder %s30, 1
      %p221 = por %p219, %p220
      %p223 = scmp.ne.s32.totalorder %s208, %s222
      %p224 = scmp.eq.s32.totalorder %s30, 0
      %p225 = por %p223, %p224
      %s227 = sadd.s32 %s226, 1
      %p230 = scmp.eq.s32.totalorder %s24, 1
      %p231 = scmp.ne.s32.totalorder %s226, %s228
      %p232 = scmp.eq.s32.totalorder %s24, 0
      %p233 = por %p231, %p232
      %p234 = scmp.ne.s32.totalorder %s226, %s228
      %p235 = scmp.eq.s32.totalorder %s29, 1
      %p236 = por %p234, %p235
      %p237 = scmp.ne.s32.totalorder %s228, %s229
      %p238 = scmp.eq.s32.totalorder %s29, 0
      %p239 = por %p237, %p238
      %p240 = scmp.ne.s32.totalorder %s228, %s229
      %p241 = scmp.eq.s32.totalorder %s30, 1
      %p242 = por %p240, %p241
      %p244 = scmp.ne.s32.totalorder %s229, %s243
      %p245 = scmp.eq.s32.totalorder %s30, 0
      %p246 = por %p244, %p245
      %s248 = sadd.s32 %s247, 1
      %p251 = scmp.eq.s32.totalorder %s24, 1
      %p252 = scmp.ne.s32.totalorder %s247, %s249
      %p253 = scmp.eq.s32.totalorder %s24, 0
      %p254 = por %p252, %p253
      %p255 = scmp.ne.s32.totalorder %s247, %s249
      %p256 = scmp.eq.s32.totalorder %s29, 1
      %p257 = por %p255, %p256
      %p258 = scmp.ne.s32.totalorder %s249, %s250
      %p259 = scmp.eq.s32.totalorder %s29, 0
      %p260 = por %p258, %p259
      %p261 = scmp.ne.s32.totalorder %s249, %s250
      %p262 = scmp.eq.s32.totalorder %s30, 1
      %p263 = por %p261, %p262
      %p265 = scmp.ne.s32.totalorder %s250, %s264
      %p266 = scmp.eq.s32.totalorder %s30, 0
      %p267 = por %p265, %p266
      %s268 = ssub.s32 %s24, %s31
      %p269 = scmp.eq.s32.totalorder %s268, 0
      %s271 = sadd.s32 %s270, 1
      %s272 = scalar_select %p269, %s270, %s271
      %p275 = pneg %p269
      %p276 = scmp.eq.s32.totalorder %s24, 1
      %p277 = por %p275, %p276
      %p278 = scmp.ne.s32.totalorder %s270, %s273
      %p279 = scmp.eq.s32.totalorder %s24, 0
      %p280 = por %p278, %p279
      %p281 = scmp.ne.s32.totalorder %s270, %s273
      %p282 = scmp.eq.s32.totalorder %s29, 1
      %p283 = por %p281, %p282
      %p284 = scmp.ne.s32.totalorder %s273, %s274
      %p285 = scmp.eq.s32.totalorder %s29, 0
      %p286 = por %p284, %p285
      %p287 = scmp.ne.s32.totalorder %s273, %s274
      %p288 = scmp.eq.s32.totalorder %s30, 1
      %p289 = por %p287, %p288
      %p291 = scmp.ne.s32.totalorder %s274, %s290
      %p292 = scmp.eq.s32.totalorder %s30, 0
      %p293 = por %p291, %p292
      %p294 = scmp.le.s32.totalorder 1, %s24
      %p295 = scmp.lt.s32.totalorder %s24, 3
      %p296 = pnand %p294, %p295
      %p297 = pneg %p296
      // Predicated region
      $region9: #{tpu_custom_call.1} parent=5 // pred_check
        _
      $region10: #{tpu_custom_call.1} parent=5 // pred_check_branch
        %299 = sbr.rel (%p296) target = $region12
      $region11: #{tpu_custom_call.1} parent=5 // pred_region
        %s300 = ssub.s32 %s24, 1
        // Predicated region
        $region13: #{tpu_custom_call.1} parent=11 // pred_check
          %p301 = pneg %p71
        $region14: #{tpu_custom_call.1} parent=11 // pred_check_branch
          %303 = sbr.rel (%p301) target = $region16
        $region15: #{tpu_custom_call.1} parent=11 // pred_region
          _
        $region16: #{tpu_custom_call.1} parent=11 // pred_fallthru
          _
        // Predicated region
        $region17: #{tpu_custom_call.1} parent=11 // pred_check
          %p304 = pneg %p92
        $region18: #{tpu_custom_call.1} parent=11 // pred_check_branch
          %306 = sbr.rel (%p304) target = $region20
        $region19: #{tpu_custom_call.1} parent=11 // pred_region
          %s308 = ssub.s32 16, 16
          %309 = vsyncadd [#allocation3], %s308
          %s311 = sshll.u32 [#allocation2], 4
          %s312 = int_to_ptr.vmem [resolvable:$true] %s311
          %314 = dma.hbm_to_vmem [thread:$0]  %s2, 16, %s312, [#allocation3]
        $region20: #{tpu_custom_call.1} parent=11 // pred_fallthru
          _
        // Predicated region
        $region21: #{tpu_custom_call.1} parent=11 // pred_check
          %p315 = pneg %p113
        $region22: #{tpu_custom_call.1} parent=11 // pred_check_branch
          %317 = sbr.rel (%p315) target = $region24
        $region23: #{tpu_custom_call.1} parent=11 // pred_region
          _
        $region24: #{tpu_custom_call.1} parent=11 // pred_fallthru
          _
        // Predicated region
        $region25: #{tpu_custom_call.1} parent=11 // pred_check
          %p318 = pneg %p134
        $region26: #{tpu_custom_call.1} parent=11 // pred_check_branch
          %320 = sbr.rel (%p318) target = $region28
        $region27: #{tpu_custom_call.1} parent=11 // pred_region
          %s322 = ssub.s32 16, 16
          %323 = vsyncadd [#allocation6], %s322
          %s325 = sshll.u32 [#allocation5], 4
          %s326 = int_to_ptr.vmem [resolvable:$true] %s325
          %328 = dma.hbm_to_vmem [thread:$0]  %s4, 16, %s326, [#allocation6]
        $region28: #{tpu_custom_call.1} parent=11 // pred_fallthru
          _
        // Predicated region
        $region29: #{tpu_custom_call.1} parent=11 // pred_check
          %p329 = pneg %p155
        $region30: #{tpu_custom_call.1} parent=11 // pred_check_branch
          %331 = sbr.rel (%p329) target = $region32
        $region31: #{tpu_custom_call.1} parent=11 // pred_region
          %s333 = ssub.s32 16, 16
          %334 = vsyncadd [#allocation6], %s333
          %s336 = sshll.u32 [#allocation7], 4
          %s337 = int_to_ptr.vmem [resolvable:$true] %s336
          %339 = dma.hbm_to_vmem [thread:$0]  %s5, 16, %s337, [#allocation6]
        $region32: #{tpu_custom_call.1} parent=11 // pred_fallthru
          _
        // Predicated region
        $region33: #{tpu_custom_call.1} parent=11 // pred_check
          %p340 = pneg %p176
        $region34: #{tpu_custom_call.1} parent=11 // pred_check_branch
          %342 = sbr.rel (%p340) target = $region36
        $region35: #{tpu_custom_call.1} parent=11 // pred_region
          %s344 = ssub.s32 16, 16
          %345 = vsyncadd [#allocation9], %s344
          %s347 = sshll.u32 [#allocation8], 4
          %s348 = int_to_ptr.vmem [resolvable:$true] %s347
          %350 = dma.hbm_to_vmem [thread:$0]  %s6, 16, %s348, [#allocation9]
        $region36: #{tpu_custom_call.1} parent=11 // pred_fallthru
          _
        // Predicated region
        $region37: #{tpu_custom_call.1} parent=11 // pred_check
          %p351 = pneg %p197
        $region38: #{tpu_custom_call.1} parent=11 // pred_check_branch
          %353 = sbr.rel (%p351) target = $region40
        $region39: #{tpu_custom_call.1} parent=11 // pred_region
          %s355 = ssub.s32 256, 256
          %356 = vsyncadd [#allocation9], %s355
          %s357 = sshll.u32 [#allocation10], 4
          %s358 = int_to_ptr.vmem [resolvable:$true] %s357
          %363 = dma.hbm_to_vmem [thread:$0]  %s7, 256, %s358, [#allocation9], 64, 64, 4
        $region40: #{tpu_custom_call.1} parent=11 // pred_fallthru
          _
        // Predicated region
        $region41: #{tpu_custom_call.1} parent=11 // pred_check
          %p364 = pneg %p218
        $region42: #{tpu_custom_call.1} parent=11 // pred_check_branch
          %366 = sbr.rel (%p364) target = $region44
        $region43: #{tpu_custom_call.1} parent=11 // pred_region
          %s368 = ssub.s32 16, 16
          %369 = vsyncadd [#allocation12], %s368
          %s371 = sshll.u32 [#allocation11], 4
          %s372 = int_to_ptr.vmem [resolvable:$true] %s371
          %374 = dma.hbm_to_vmem [thread:$0]  %s8, 16, %s372, [#allocation12]
        $region44: #{tpu_custom_call.1} parent=11 // pred_fallthru
          _
        // Predicated region
        $region45: #{tpu_custom_call.1} parent=11 // pred_check
          %p375 = pneg %p239
        $region46: #{tpu_custom_call.1} parent=11 // pred_check_branch
          %377 = sbr.rel (%p375) target = $region48
        $region47: #{tpu_custom_call.1} parent=11 // pred_region
          _
        $region48: #{tpu_custom_call.1} parent=11 // pred_fallthru
          _
        // Predicated region
        $region49: #{tpu_custom_call.1} parent=11 // pred_check
          %p378 = pneg %p260
        $region50: #{tpu_custom_call.1} parent=11 // pred_check_branch
          %380 = sbr.rel (%p378) target = $region52
        $region51: #{tpu_custom_call.1} parent=11 // pred_region
          _
        $region52: #{tpu_custom_call.1} parent=11 // pred_fallthru
          _
      $region12: #{tpu_custom_call.1} parent=5 // pred_fallthru
        _
      %p381 = scmp.lt.s32.totalorder %s24, 2
      // Predicated region
      $region53: #{tpu_custom_call.1} parent=5 // pred_check
        %p382 = pneg %p381
      $region54: #{tpu_custom_call.1} parent=5 // pred_check_branch
        %384 = sbr.rel (%p382) target = $region56
      $region55: #{tpu_custom_call.1} parent=5 // pred_region
        // Predicated region
        $region57: #{tpu_custom_call.1} parent=55 // pred_check
          %p385 = pneg %p44
        $region58: #{tpu_custom_call.1} parent=55 // pred_check_branch
          %387 = sbr.rel (%p385) target = $region60
        $region59: #{tpu_custom_call.1} parent=55 // pred_region
          %p388 = scmp.lt.s32.totalorder %s24, 1
          %s389 = scalar_select %p388, %s24, 1
          %s390 = smul.addr %s389, 8
          %s391 = scalar_lea.vmem %s0, %s390
        $region60: #{tpu_custom_call.1} parent=55 // pred_fallthru
          _
      $region56: #{tpu_custom_call.1} parent=5 // pred_fallthru
        _
      %p392 = scmp.le.s32.totalorder 1, %s24
      %p393 = scmp.lt.s32.totalorder %s24, 3
      %p394 = pnand %p392, %p393
      %p395 = pneg %p394
      // Predicated region
      $region61: #{tpu_custom_call.1} parent=5 // pred_check
        _
      $region62: #{tpu_custom_call.1} parent=5 // pred_check_branch
        %397 = sbr.rel (%p394) target = $region64
      $region63: #{tpu_custom_call.1} parent=5 // pred_region
        %s398 = ssub.s32 %s24, 1
        // Predicated region
        $region65: #{tpu_custom_call.1} parent=63 // pred_check
          %p399 = pneg %p92
        $region66: #{tpu_custom_call.1} parent=63 // pred_check_branch
          %401 = sbr.rel (%p399) target = $region68
        $region67: #{tpu_custom_call.1} parent=63 // pred_region
          %402 = dma.done [#allocation3], 16
        $region68: #{tpu_custom_call.1} parent=63 // pred_fallthru
          _
        // Predicated region
        $region69: #{tpu_custom_call.1} parent=63 // pred_check
          %p403 = pneg %p134
        $region70: #{tpu_custom_call.1} parent=63 // pred_check_branch
          %405 = sbr.rel (%p403) target = $region72
        $region71: #{tpu_custom_call.1} parent=63 // pred_region
          %406 = dma.done [#allocation6], 16
        $region72: #{tpu_custom_call.1} parent=63 // pred_fallthru
          _
        // Predicated region
        $region73: #{tpu_custom_call.1} parent=63 // pred_check
          %p407 = pneg %p155
        $region74: #{tpu_custom_call.1} parent=63 // pred_check_branch
          %409 = sbr.rel (%p407) target = $region76
        $region75: #{tpu_custom_call.1} parent=63 // pred_region
          %410 = dma.done [#allocation6], 16
        $region76: #{tpu_custom_call.1} parent=63 // pred_fallthru
          _
        // Predicated region
        $region77: #{tpu_custom_call.1} parent=63 // pred_check
          %p411 = pneg %p176
        $region78: #{tpu_custom_call.1} parent=63 // pred_check_branch
          %413 = sbr.rel (%p411) target = $region80
        $region79: #{tpu_custom_call.1} parent=63 // pred_region
          %414 = dma.done [#allocation9], 16
        $region80: #{tpu_custom_call.1} parent=63 // pred_fallthru
          _
        // Predicated region
        $region81: #{tpu_custom_call.1} parent=63 // pred_check
          %p415 = pneg %p197
        $region82: #{tpu_custom_call.1} parent=63 // pred_check_branch
          %417 = sbr.rel (%p415) target = $region84
        $region83: #{tpu_custom_call.1} parent=63 // pred_region
          %418 = dma.done [#allocation9], 256
        $region84: #{tpu_custom_call.1} parent=63 // pred_fallthru
          _
        // Predicated region
        $region85: #{tpu_custom_call.1} parent=63 // pred_check
          %p419 = pneg %p218
        $region86: #{tpu_custom_call.1} parent=63 // pred_check_branch
          %421 = sbr.rel (%p419) target = $region88
        $region87: #{tpu_custom_call.1} parent=63 // pred_region
          %422 = dma.done [#allocation12], 16
        $region88: #{tpu_custom_call.1} parent=63 // pred_fallthru
          _
        %p423 = scmp.lt.s32.totalorder %s29, 1
        %s424 = scalar_select %p423, %s29, 1
        %s425 = smul.addr %s424, 8
        %s426 = scalar_lea.vmem %s0, %s425
        %p427 = pneg %p50
        %p428 = pneg %p47
        %p429 = pneg %p71
        %p430 = pneg %p68
        %p431 = pneg %p92
        %p432 = pneg %p89
        %p433 = pneg %p113
        %p434 = pneg %p110
        %p435 = pneg %p134
        %p436 = pneg %p131
        %p437 = pneg %p155
        %p438 = pneg %p152
        %p439 = pneg %p176
        %p440 = pneg %p173
        %p441 = pneg %p197
        %p442 = pneg %p194
        %p443 = pneg %p218
        %p444 = pneg %p215
        %p445 = pneg %p239
        %p446 = pneg %p236
        %p447 = pneg %p260
        %p448 = pneg %p257
        %p449 = pneg %p286
        %p450 = pneg %p283
        %s451 = sand.u32 %s273, 1
        %s452 = scalar_lea.sflag [#allocation4], %s451
        %s453 = sand.u32 %s273, 1
        %s454 = smul.addr %s453, 8
        %s455 = scalar_lea.vmem [#allocation13], %s454
        %p456 = scmp.lt.s32.totalorder %s29, 1
        %s457 = scalar_select %p456, %s29, 1
        %s458 = smul.addr %s457, 8
        %s459 = scalar_lea.vmem %s0, %s458
        %v461 = vld [vmem:[%s459] sm:$0xff]
        %v462 = vpack.c.bf16 %v461, %v461
        %v463 = vld [vmem:[%s1] sm:$0xf]
        %v464 = vld [vmem:[%s1 + $0x4] sm:$0xf]
        %v465 = vld [vmem:[%s1 + $0x8] sm:$0xf]
        %v466 = vld [vmem:[%s1 + $0xc] sm:$0xf]
        %v467 = vld [vmem:[#allocation2] sm:$0x1]
        %v469 = vlaneseq
        %v470 = vshrl.u32 %v469, 7
        %v471 = vsub.s32 0, %v470
        %v472 = vrot.slane %v467, %v471
        %v478 = vunpack.c.l.b16 %v463
        %v479 = vunpack.c.l.b16 %v464
        %v480 = vunpack.c.l.b16 %v465
        %v481 = vunpack.c.l.b16 %v466
        %v482 = vpack.c.b16 %v479, %v478
        %v483 = vpack.c.b16 %v481, %v480
        %vm486 = vcmask 261120
        %v488 = vsel %vm486, %v462, 0
        %490 = vmatprep.subr.bf16.mxu0 0
        %491 = vmatpush1.bf16.msra.mxu0 0
        %492 = vmatprep.subr.bf16.mxu0 0
        %493 = vmatpush1.bf16.msra.mxu0 0
        %494 = vmatprep.subr.bf16.mxu0 0
        %495 = vmatpush1.bf16.msra.mxu0 0
        %496 = vmatprep.subr.bf16.mxu0 0
        %497 = vmatpush1.bf16.msra.mxu0 0
        %498 = vmatprep.subr.bf16.mxu0 0
        %499 = vmatpush1.bf16.msra.mxu0 0
        %500 = vmatprep.subr.bf16.mxu0 0
        %501 = vmatpush1.bf16.msra.mxu0 0
        %502 = vmatprep.subr.bf16.mxu0 0
        %503 = vmatpush1.bf16.msra.mxu0 %v483
        %504 = vmatprep.subr.bf16.mxu0 0
        %505 = vmatpush1.bf16.msra.mxu0 %v482
        %506 = vmatprep.subr.bf16.mxu0 0
        %507 = vmatpush2.bf16.msra.mxu0 0
        %508 = vmatprep.subr.bf16.mxu0 0
        %509 = vmatpush2.bf16.msra.mxu0 0
        %510 = vmatprep.subr.bf16.mxu0 0
        %511 = vmatpush2.bf16.msra.mxu0 0
        %512 = vmatprep.subr.bf16.mxu0 0
        %513 = vmatpush2.bf16.msra.mxu0 0
        %514 = vmatprep.subr.bf16.mxu0 0
        %515 = vmatpush2.bf16.msra.mxu0 0
        %516 = vmatprep.subr.bf16.mxu0 0
        %517 = vmatpush2.bf16.msra.mxu0 0
        %518 = vmatprep.subr.bf16.mxu0 0
        %519 = vmatpush2.bf16.msra.mxu0 0
        %520 = vmatprep.subr.bf16.mxu0 0
        %521 = vmatpush2.bf16.msra.mxu0 0
        %522 = vmatprep.mubr.bf16.mxu0 0
        %523 = vmatmul.mubr.bf16.gmra.mxu0 %v488
        %v524 = vpop.f32.mrf.mxu0
        %v525 = vadd.f32 %v472, %v524
        %v526 = vpop.f32.mrf.mxu0
        %v527 = vpop.f32.mrf.mxu0
        %v528 = vpop.f32.mrf.mxu0
        %529 = vdwg.mxu0
        %531 = vrot.lane.b32.xlu0 %v525, 112
        %v532 = vpop.permute.xlu0 %531
        %v534 = vpack.c.bf16 %v525, %v525
        %v535 = vpack.c.bf16 %v532, %v532
        %537 = vrot.lane.b32.xlu0 %v534, 96
        %v538 = vpop.permute.xlu0 %537
        %vm539 = vcmask 130048
        %v541 = vsel %vm539, %v534, 0
        %v544 = vsel %vm539, %v538, 0
        %546 = vmatprep.subr.bf16.mxu0 0
        %547 = vmatpush1.bf16.xpose.msra.mxu0 0
        %548 = vmatprep.subr.bf16.mxu0 0
        %549 = vmatpush1.bf16.xpose.msra.mxu0 0
        %550 = vmatprep.subr.bf16.mxu0 0
        %551 = vmatpush1.bf16.xpose.msra.mxu0 0
        %552 = vmatprep.subr.bf16.mxu0 0
        %553 = vmatpush1.bf16.xpose.msra.mxu0 0
        %554 = vmatprep.subr.bf16.mxu0 0
        %555 = vmatpush1.bf16.xpose.msra.mxu0 0
        %556 = vmatprep.subr.bf16.mxu0 0
        %557 = vmatpush1.bf16.xpose.msra.mxu0 0
        %558 = vmatprep.subr.bf16.mxu0 0
        %559 = vmatpush1.bf16.xpose.msra.mxu0 0
        %560 = vmatprep.subr.bf16.mxu0 0
        %561 = vmatpush1.bf16.xpose.msra.mxu0 %v544
        %562 = vmatprep.subr.bf16.mxu0 0
        %563 = vmatpush2.bf16.xpose.msra.mxu0 0
        %564 = vmatprep.subr.bf16.mxu0 0
        %565 = vmatpush2.bf16.xpose.msra.mxu0 0
        %566 = vmatprep.subr.bf16.mxu0 0
        %567 = vmatpush2.bf16.xpose.msra.mxu0 0
        %568 = vmatprep.subr.bf16.mxu0 0
        %569 = vmatpush2.bf16.xpose.msra.mxu0 0
        %570 = vmatprep.subr.bf16.mxu0 0
        %571 = vmatpush2.bf16.xpose.msra.mxu0 0
        %572 = vmatprep.subr.bf16.mxu0 0
        %573 = vmatpush2.bf16.xpose.msra.mxu0 0
        %574 = vmatprep.subr.bf16.mxu0 0
        %575 = vmatpush2.bf16.xpose.msra.mxu0 0
        %576 = vmatprep.subr.bf16.mxu0 0
        %577 = vmatpush2.bf16.xpose.msra.mxu0 0
        %578 = vmatprep.mubr.bf16.mxu0 0
        %579 = vmatmul.mubr.bf16.gmra.mxu0 %v541
        %v580 = vpop.f32.mrf.mxu0
        %v581 = vadd.f32 0.0, %v580
        %v582 = vpop.f32.mrf.mxu0
        %v583 = vpop.f32.mrf.mxu0
        %v584 = vpop.f32.mrf.mxu0
        %585 = vdwg.mxu0
        %587 = vrot.lane.b32.xlu0 %v535, 96
        %v588 = vpop.permute.xlu0 %587
        %v590 = vsel %vm539, %v535, 0
        %v593 = vsel %vm539, %v588, 0
        %595 = vmatprep.subr.bf16.mxu0 0
        %596 = vmatpush1.bf16.xpose.msra.mxu0 0
        %597 = vmatprep.subr.bf16.mxu0 0
        %598 = vmatpush1.bf16.xpose.msra.mxu0 0
        %599 = vmatprep.subr.bf16.mxu0 0
        %600 = vmatpush1.bf16.xpose.msra.mxu0 0
        %601 = vmatprep.subr.bf16.mxu0 0
        %602 = vmatpush1.bf16.xpose.msra.mxu0 0
        %603 = vmatprep.subr.bf16.mxu0 0
        %604 = vmatpush1.bf16.xpose.msra.mxu0 0
        %605 = vmatprep.subr.bf16.mxu0 0
        %606 = vmatpush1.bf16.xpose.msra.mxu0 0
        %607 = vmatprep.subr.bf16.mxu0 0
        %608 = vmatpush1.bf16.xpose.msra.mxu0 0
        %609 = vmatprep.subr.bf16.mxu0 0
        %610 = vmatpush1.bf16.xpose.msra.mxu0 %v593
        %611 = vmatprep.subr.bf16.mxu0 0
        %612 = vmatpush2.bf16.xpose.msra.mxu0 0
        %613 = vmatprep.subr.bf16.mxu0 0
        %614 = vmatpush2.bf16.xpose.msra.mxu0 0
        %615 = vmatprep.subr.bf16.mxu0 0
        %616 = vmatpush2.bf16.xpose.msra.mxu0 0
        %617 = vmatprep.subr.bf16.mxu0 0
        %618 = vmatpush2.bf16.xpose.msra.mxu0 0
        %619 = vmatprep.subr.bf16.mxu0 0
        %620 = vmatpush2.bf16.xpose.msra.mxu0 0
        %621 = vmatprep.subr.bf16.mxu0 0
        %622 = vmatpush2.bf16.xpose.msra.mxu0 0
        %623 = vmatprep.subr.bf16.mxu0 0
        %624 = vmatpush2.bf16.xpose.msra.mxu0 0
        %625 = vmatprep.subr.bf16.mxu0 0
        %626 = vmatpush2.bf16.xpose.msra.mxu0 0
        %627 = vmatprep.mubr.bf16.mxu0 0
        %628 = vmatmul.mubr.bf16.gmra.mxu0 %v590
        %v629 = vpop.f32.mrf.mxu0
        %v630 = vadd.f32 0.0, %v629
        %v631 = vpop.f32.mrf.mxu0
        %v632 = vpop.f32.mrf.mxu0
        %v633 = vpop.f32.mrf.mxu0
        %634 = vdwg.mxu0
        %vm635 = vcmask 64512
        %v636 = vsel %vm635, %v581, -inf
        %637 = vmax.xlane.f32.xlu0 %v636
        %v638 = vpop.xlane.xlu0 %637
        %v639 = vsel %vm635, %v630, -inf
        %640 = vmax.xlane.f32.xlu0 %v639
        %v641 = vpop.xlane.xlu0 %640
        %v642 = vsub.f32 %v581, %v638
        %v643 = vsub.f32 %v630, %v641
        %v644 = vmul.f32 %v642, 1.442695
        %v645 = vpow.pop %v644
        %v646 = vmul.f32 %v643, 1.442695
        %v647 = vpow.pop %v646
        %v648 = vsel %vm635, %v645, 0.0
        %649 = vadd.xlane.f32.xlu0 %v648
        %v650 = vpop.xlane.xlu0 %649
        %v651 = vsel %vm635, %v647, 0.0
        %652 = vadd.xlane.f32.xlu0 %v651
        %v653 = vpop.xlane.xlu0 %652
        %v654 = vrcp.pop %v650
        %v655 = vrcp.pop %v653
        %v656 = vmul.f32 %v645, %v654
        %v657 = vmul.f32 %v647, %v655
        %v658 = vpack.c.bf16 %v656, %v656
        %v659 = vpack.c.bf16 %v657, %v657
        %660 = vrot.lane.b32.xlu0 %v534, 64
        %v661 = vpop.permute.xlu0 %660
        %v663 = vsel %vm635, %v658, 0
        %vm665 = vcmask 1043456
        %v667 = vsel %vm665, %v661, 0
        %669 = vmatprep.subr.bf16.mxu0 0
        %670 = vmatpush1.bf16.msra.mxu0 0
        %671 = vmatprep.subr.bf16.mxu0 0
        %672 = vmatpush1.bf16.msra.mxu0 0
        %673 = vmatprep.subr.bf16.mxu0 0
        %674 = vmatpush1.bf16.msra.mxu0 0
        %675 = vmatprep.subr.bf16.mxu0 0
        %676 = vmatpush1.bf16.msra.mxu0 0
        %677 = vmatprep.subr.bf16.mxu0 0
        %678 = vmatpush1.bf16.msra.mxu0 0
        %679 = vmatprep.subr.bf16.mxu0 0
        %680 = vmatpush1.bf16.msra.mxu0 0
        %681 = vmatprep.subr.bf16.mxu0 0
        %682 = vmatpush1.bf16.msra.mxu0 0
        %683 = vmatprep.subr.bf16.mxu0 0
        %684 = vmatpush1.bf16.msra.mxu0 %v667
        %685 = vmatprep.subr.bf16.mxu0 0
        %686 = vmatpush2.bf16.msra.mxu0 0
        %687 = vmatprep.subr.bf16.mxu0 0
        %688 = vmatpush2.bf16.msra.mxu0 0
        %689 = vmatprep.subr.bf16.mxu0 0
        %690 = vmatpush2.bf16.msra.mxu0 0
        %691 = vmatprep.subr.bf16.mxu0 0
        %692 = vmatpush2.bf16.msra.mxu0 0
        %693 = vmatprep.subr.bf16.mxu0 0
        %694 = vmatpush2.bf16.msra.mxu0 0
        %695 = vmatprep.subr.bf16.mxu0 0
        %696 = vmatpush2.bf16.msra.mxu0 0
        %697 = vmatprep.subr.bf16.mxu0 0
        %698 = vmatpush2.bf16.msra.mxu0 0
        %699 = vmatprep.subr.bf16.mxu0 0
        %700 = vmatpush2.bf16.msra.mxu0 0
        %701 = vmatprep.mubr.bf16.mxu0 0
        %702 = vmatmul.mubr.bf16.gmra.mxu0 %v663
        %v703 = vpop.f32.mrf.mxu0
        %v704 = vadd.f32 0.0, %v703
        %v705 = vpop.f32.mrf.mxu0
        %v706 = vpop.f32.mrf.mxu0
        %v707 = vpop.f32.mrf.mxu0
        %708 = vdwg.mxu0
        %709 = vrot.lane.b32.xlu0 %v535, 64
        %v710 = vpop.permute.xlu0 %709
        %v712 = vsel %vm635, %v659, 0
        %v715 = vsel %vm665, %v710, 0
        %717 = vmatprep.subr.bf16.mxu0 0
        %718 = vmatpush1.bf16.msra.mxu0 0
        %719 = vmatprep.subr.bf16.mxu0 0
        %720 = vmatpush1.bf16.msra.mxu0 0
        %721 = vmatprep.subr.bf16.mxu0 0
        %722 = vmatpush1.bf16.msra.mxu0 0
        %723 = vmatprep.subr.bf16.mxu0 0
        %724 = vmatpush1.bf16.msra.mxu0 0
        %725 = vmatprep.subr.bf16.mxu0 0
        %726 = vmatpush1.bf16.msra.mxu0 0
        %727 = vmatprep.subr.bf16.mxu0 0
        %728 = vmatpush1.bf16.msra.mxu0 0
        %729 = vmatprep.subr.bf16.mxu0 0
        %730 = vmatpush1.bf16.msra.mxu0 0
        %731 = vmatprep.subr.bf16.mxu0 0
        %732 = vmatpush1.bf16.msra.mxu0 %v715
        %733 = vmatprep.subr.bf16.mxu0 0
        %734 = vmatpush2.bf16.msra.mxu0 0
        %735 = vmatprep.subr.bf16.mxu0 0
        %736 = vmatpush2.bf16.msra.mxu0 0
        %737 = vmatprep.subr.bf16.mxu0 0
        %738 = vmatpush2.bf16.msra.mxu0 0
        %739 = vmatprep.subr.bf16.mxu0 0
        %740 = vmatpush2.bf16.msra.mxu0 0
        %741 = vmatprep.subr.bf16.mxu0 0
        %742 = vmatpush2.bf16.msra.mxu0 0
        %743 = vmatprep.subr.bf16.mxu0 0
        %744 = vmatpush2.bf16.msra.mxu0 0
        %745 = vmatprep.subr.bf16.mxu0 0
        %746 = vmatpush2.bf16.msra.mxu0 0
        %747 = vmatprep.subr.bf16.mxu0 0
        %748 = vmatpush2.bf16.msra.mxu0 0
        %749 = vmatprep.mubr.bf16.mxu0 0
        %750 = vmatmul.mubr.bf16.gmra.mxu0 %v712
        %v751 = vpop.f32.mrf.mxu0
        %v752 = vadd.f32 0.0, %v751
        %v753 = vpop.f32.mrf.mxu0
        %v754 = vpop.f32.mrf.mxu0
        %v755 = vpop.f32.mrf.mxu0
        %756 = vdwg.mxu0
        %v757 = vpack.c.bf16 %v704, %v704
        %v758 = vpack.c.bf16 %v752, %v752
        %760 = vrot.lane.b32.xlu0 %v758, 16
        %v761 = vpop.permute.xlu0 %760
        %v764 = vsel %vm539, %v757, %v761
        %v765 = vld [vmem:[%s3] sm:$0xf]
        %v766 = vld [vmem:[%s3 + $0x4] sm:$0xf]
        %v767 = vld [vmem:[%s3 + $0x8] sm:$0xf]
        %v768 = vld [vmem:[%s3 + $0xc] sm:$0xf]
        %v769 = vld [vmem:[#allocation5] sm:$0x1]
        %v771 = vlaneseq
        %v772 = vshrl.u32 %v771, 7
        %v773 = vsub.s32 0, %v772
        %v774 = vrot.slane %v769, %v773
        %v780 = vunpack.c.l.b16 %v765
        %v781 = vunpack.c.l.b16 %v766
        %v782 = vunpack.c.l.b16 %v767
        %v783 = vunpack.c.l.b16 %v768
        %v784 = vpack.c.b16 %v781, %v780
        %v785 = vpack.c.b16 %v783, %v782
        %v788 = vsel %vm486, %v764, 0
        %790 = vmatprep.subr.bf16.mxu0 0
        %791 = vmatpush1.bf16.msra.mxu0 0
        %792 = vmatprep.subr.bf16.mxu0 0
        %793 = vmatpush1.bf16.msra.mxu0 0
        %794 = vmatprep.subr.bf16.mxu0 0
        %795 = vmatpush1.bf16.msra.mxu0 0
        %796 = vmatprep.subr.bf16.mxu0 0
        %797 = vmatpush1.bf16.msra.mxu0 0
        %798 = vmatprep.subr.bf16.mxu0 0
        %799 = vmatpush1.bf16.msra.mxu0 0
        %800 = vmatprep.subr.bf16.mxu0 0
        %801 = vmatpush1.bf16.msra.mxu0 0
        %802 = vmatprep.subr.bf16.mxu0 0
        %803 = vmatpush1.bf16.msra.mxu0 %v785
        %804 = vmatprep.subr.bf16.mxu0 0
        %805 = vmatpush1.bf16.msra.mxu0 %v784
        %806 = vmatprep.subr.bf16.mxu0 0
        %807 = vmatpush2.bf16.msra.mxu0 0
        %808 = vmatprep.subr.bf16.mxu0 0
        %809 = vmatpush2.bf16.msra.mxu0 0
        %810 = vmatprep.subr.bf16.mxu0 0
        %811 = vmatpush2.bf16.msra.mxu0 0
        %812 = vmatprep.subr.bf16.mxu0 0
        %813 = vmatpush2.bf16.msra.mxu0 0
        %814 = vmatprep.subr.bf16.mxu0 0
        %815 = vmatpush2.bf16.msra.mxu0 0
        %816 = vmatprep.subr.bf16.mxu0 0
        %817 = vmatpush2.bf16.msra.mxu0 0
        %818 = vmatprep.subr.bf16.mxu0 0
        %819 = vmatpush2.bf16.msra.mxu0 0
        %820 = vmatprep.subr.bf16.mxu0 0
        %821 = vmatpush2.bf16.msra.mxu0 0
        %822 = vmatprep.mubr.bf16.mxu0 0
        %823 = vmatmul.mubr.bf16.gmra.mxu0 %v788
        %v824 = vpop.f32.mrf.mxu0
        %v825 = vadd.f32 %v774, %v824
        %v826 = vpop.f32.mrf.mxu0
        %v827 = vpop.f32.mrf.mxu0
        %v828 = vpop.f32.mrf.mxu0
        %829 = vdwg.mxu0
        %v830 = vld [vmem:[#allocation7] sm:$0x1]
        %v831 = vld [vmem:[#allocation8] sm:$0x1]
        %v832 = vadd.f32 %v825, %v461
        %v833 = vsel %vm486, %v832, 0.0
        %834 = vadd.xlane.f32.xlu0 %v833
        %v835 = vpop.xlane.xlu0 %834
        %v836 = vrcp.pop 32.0
        %v837 = vmul.f32 %v835, %v836
        %v838 = vsub.f32 %v832, %v837
        %v839 = vmul.f32 %v838, %v838
        %v840 = vsel %vm486, %v839, 0.0
        %841 = vadd.xlane.f32.xlu0 %v840
        %v842 = vpop.xlane.xlu0 %841
        %v843 = vmul.f32 %v842, %v836
        %v844 = vadd.f32 %v843, 1e-05
        %v845 = vrsqrt.pop %v844
        %v846 = vmul.f32 %v838, %v845
        %v848 = vlaneseq
        %v849 = vshrl.u32 %v848, 7
        %v850 = vsub.s32 0, %v849
        %v851 = vrot.slane %v830, %v850
        %v853 = vmul.f32 %v846, %v851
        %v855 = vlaneseq
        %v856 = vshrl.u32 %v855, 7
        %v857 = vsub.s32 0, %v856
        %v858 = vrot.slane %v831, %v857
        %v860 = vadd.f32 %v853, %v858
        %v861 = vpack.c.bf16 %v860, %v860
        %v862 = vld [vmem:[#allocation10] sm:$0xf]
        %v863 = vld [vmem:[#allocation10 + $0x4] sm:$0xf]
        %v864 = vld [vmem:[#allocation10 + $0x8] sm:$0xf]
        %v865 = vld [vmem:[#allocation10 + $0xc] sm:$0xf]
        %v866 = vld [vmem:[#allocation11] sm:$0x1]
        %v868 = vlaneseq
        %v869 = vshrl.u32 %v868, 7
        %v870 = vsub.s32 0, %v869
        %v871 = vrot.slane %v866, %v870
        %v877 = vunpack.c.l.b16 %v862
        %v878 = vunpack.c.l.b16 %v863
        %v879 = vunpack.c.l.b16 %v864
        %v880 = vunpack.c.l.b16 %v865
        %v881 = vpack.c.b16 %v878, %v877
        %v882 = vpack.c.b16 %v880, %v879
        %v886 = vsel %vm486, %v861, 0
        %888 = vmatprep.subr.bf16.mxu0 0
        %889 = vmatpush1.bf16.msra.mxu0 0
        %890 = vmatprep.subr.bf16.mxu0 0
        %891 = vmatpush1.bf16.msra.mxu0 0
        %892 = vmatprep.subr.bf16.mxu0 0
        %893 = vmatpush1.bf16.msra.mxu0 0
        %894 = vmatprep.subr.bf16.mxu0 0
        %895 = vmatpush1.bf16.msra.mxu0 0
        %896 = vmatprep.subr.bf16.mxu0 0
        %897 = vmatpush1.bf16.msra.mxu0 0
        %898 = vmatprep.subr.bf16.mxu0 0
        %899 = vmatpush1.bf16.msra.mxu0 0
        %900 = vmatprep.subr.bf16.mxu0 0
        %901 = vmatpush1.bf16.msra.mxu0 %v882
        %902 = vmatprep.subr.bf16.mxu0 0
        %903 = vmatpush1.bf16.msra.mxu0 %v881
        %904 = vmatprep.subr.bf16.mxu0 0
        %905 = vmatpush2.bf16.msra.mxu0 0
        %906 = vmatprep.subr.bf16.mxu0 0
        %907 = vmatpush2.bf16.msra.mxu0 0
        %908 = vmatprep.subr.bf16.mxu0 0
        %909 = vmatpush2.bf16.msra.mxu0 0
        %910 = vmatprep.subr.bf16.mxu0 0
        %911 = vmatpush2.bf16.msra.mxu0 0
        %912 = vmatprep.subr.bf16.mxu0 0
        %913 = vmatpush2.bf16.msra.mxu0 0
        %914 = vmatprep.subr.bf16.mxu0 0
        %915 = vmatpush2.bf16.msra.mxu0 0
        %916 = vmatprep.subr.bf16.mxu0 0
        %917 = vmatpush2.bf16.msra.mxu0 0
        %918 = vmatprep.subr.bf16.mxu0 0
        %919 = vmatpush2.bf16.msra.mxu0 0
        %920 = vmatprep.mubr.bf16.mxu0 0
        %921 = vmatmul.mubr.bf16.gmra.mxu0 %v886
        %v922 = vpop.f32.mrf.mxu0
        %v923 = vadd.f32 %v871, %v922
        %v924 = vpop.f32.mrf.mxu0
        %v925 = vpop.f32.mrf.mxu0
        %v926 = vpop.f32.mrf.mxu0
        %927 = vdwg.mxu0
        %v928 = vmax.f32 %v923, 0.0
        %v929 = vpack.c.bf16 %v928, %v928
        %v930 = vld [vmem:[%s9] sm:$0xf]
        %v931 = vld [vmem:[%s9 + $0x4] sm:$0xf]
        %v932 = vld [vmem:[%s9 + $0x8] sm:$0xf]
        %v933 = vld [vmem:[%s9 + $0xc] sm:$0xf]
        %v934 = vld [vmem:[%s9 + $0x10] sm:$0xf]
        %v935 = vld [vmem:[%s9 + $0x14] sm:$0xf]
        %v936 = vld [vmem:[%s9 + $0x18] sm:$0xf]
        %v937 = vld [vmem:[%s9 + $0x1c] sm:$0xf]
        %v938 = vld [vmem:[%s10] sm:$0x1]
        %v940 = vlaneseq
        %v941 = vshrl.u32 %v940, 7
        %v942 = vsub.s32 0, %v941
        %v943 = vrot.slane %v938, %v942
        %v953 = vunpack.c.l.b16 %v930
        %v954 = vunpack.c.l.b16 %v931
        %v955 = vunpack.c.l.b16 %v932
        %v956 = vunpack.c.l.b16 %v933
        %v957 = vunpack.c.l.b16 %v934
        %v958 = vunpack.c.l.b16 %v935
        %v959 = vunpack.c.l.b16 %v936
        %v960 = vunpack.c.l.b16 %v937
        %v961 = vpack.c.b16 %v954, %v953
        %v962 = vpack.c.b16 %v956, %v955
        %v963 = vpack.c.b16 %v958, %v957
        %v964 = vpack.c.b16 %v960, %v959
        %vm969 = vcmask 523264
        %v971 = vsel %vm969, %v929, 0
        %973 = vmatprep.subr.bf16.mxu0 0
        %974 = vmatpush1.bf16.msra.mxu0 0
        %975 = vmatprep.subr.bf16.mxu0 0
        %976 = vmatpush1.bf16.msra.mxu0 0
        %977 = vmatprep.subr.bf16.mxu0 0
        %978 = vmatpush1.bf16.msra.mxu0 0
        %979 = vmatprep.subr.bf16.mxu0 0
        %980 = vmatpush1.bf16.msra.mxu0 0
        %981 = vmatprep.subr.bf16.mxu0 0
        %982 = vmatpush1.bf16.msra.mxu0 %v964
        %983 = vmatprep.subr.bf16.mxu0 0
        %984 = vmatpush1.bf16.msra.mxu0 %v963
        %985 = vmatprep.subr.bf16.mxu0 0
        %986 = vmatpush1.bf16.msra.mxu0 %v962
        %987 = vmatprep.subr.bf16.mxu0 0
        %988 = vmatpush1.bf16.msra.mxu0 %v961
        %989 = vmatprep.subr.bf16.mxu0 0
        %990 = vmatpush2.bf16.msra.mxu0 0
        %991 = vmatprep.subr.bf16.mxu0 0
        %992 = vmatpush2.bf16.msra.mxu0 0
        %993 = vmatprep.subr.bf16.mxu0 0
        %994 = vmatpush2.bf16.msra.mxu0 0
        %995 = vmatprep.subr.bf16.mxu0 0
        %996 = vmatpush2.bf16.msra.mxu0 0
        %997 = vmatprep.subr.bf16.mxu0 0
        %998 = vmatpush2.bf16.msra.mxu0 0
        %999 = vmatprep.subr.bf16.mxu0 0
        %1000 = vmatpush2.bf16.msra.mxu0 0
        %1001 = vmatprep.subr.bf16.mxu0 0
        %1002 = vmatpush2.bf16.msra.mxu0 0
        %1003 = vmatprep.subr.bf16.mxu0 0
        %1004 = vmatpush2.bf16.msra.mxu0 0
        %1005 = vmatprep.mubr.bf16.mxu0 0
        %1006 = vmatmul.mubr.bf16.gmra.mxu0 %v971
        %v1007 = vpop.f32.mrf.mxu0
        %v1008 = vadd.f32 %v943, %v1007
        %v1009 = vpop.f32.mrf.mxu0
        %v1010 = vpop.f32.mrf.mxu0
        %v1011 = vpop.f32.mrf.mxu0
        %1012 = vdwg.mxu0
        %v1013 = vadd.f32 %v860, %v1008
        %v1014 = vsel %vm486, %v1013, 0.0
        %1015 = vadd.xlane.f32.xlu0 %v1014
        %v1016 = vpop.xlane.xlu0 %1015
        %v1017 = vmul.f32 %v1016, %v836
        %v1018 = vsub.f32 %v1013, %v1017
        %v1019 = vmul.f32 %v1018, %v1018
        %v1020 = vsel %vm486, %v1019, 0.0
        %1021 = vadd.xlane.f32.xlu0 %v1020
        %v1022 = vpop.xlane.xlu0 %1021
        %v1023 = vmul.f32 %v1022, %v836
        %v1024 = vadd.f32 %v1023, 1e-05
        %v1025 = vrsqrt.pop %v1024
        %v1026 = vmul.f32 %v1018, %v1025
        %v1027 = vmul.f32 %v1026, %v851
        %v1028 = vadd.f32 %v1027, %v858
        %1029 = vst.msk [vmem:[%s455] sm:$0xff] %vm486, %v1028
        %s1030 = sand.u32 %s273, 1
        %s1031 = scalar_lea.sflag [#allocation4], %s1030
        %s1032 = sand.u32 %s273, 1
        %s1033 = smul.addr %s1032, 8
        %s1034 = scalar_lea.vmem [#allocation13], %s1033
        // Predicated region
        $region89: #{tpu_custom_call.1} parent=63 // pred_check
          %p1035 = pneg %p283
        $region90: #{tpu_custom_call.1} parent=63 // pred_check_branch
          %1037 = sbr.rel (%p1035) target = $region92
        $region91: #{tpu_custom_call.1} parent=63 // pred_region
          %s1039 = ssub.s32 128, 128
          %1040 = vsyncadd %s1031, %s1039
          %s1041 = smul.addr %s29, 128
          %s1042 = scalar_lea.hbm %s11, %s1041
          %s1044 = sshll.u32 %s1034, 4
          %s1045 = int_to_ptr.vmem [resolvable:$true] %s1044
          %1047 = dma.vmem_to_hbm [thread:$0]  %s1045, 128, %s1042, %s1031
        $region92: #{tpu_custom_call.1} parent=63 // pred_fallthru
          _
      $region64: #{tpu_custom_call.1} parent=5 // pred_fallthru
        _
      %p1048 = scmp.le.s32.totalorder 2, %s24
      // Predicated region
      $region93: #{tpu_custom_call.1} parent=5 // pred_check
        %p1049 = pneg %p1048
      $region94: #{tpu_custom_call.1} parent=5 // pred_check_branch
        %1051 = sbr.rel (%p1049) target = $region96
      $region95: #{tpu_custom_call.1} parent=5 // pred_region
        %s1052 = ssub.s32 %s24, 2
        // Predicated region
        $region97: #{tpu_custom_call.1} parent=95 // pred_check
          %p1053 = pneg %p289
        $region98: #{tpu_custom_call.1} parent=95 // pred_check_branch
          %1055 = sbr.rel (%p1053) target = $region100
        $region99: #{tpu_custom_call.1} parent=95 // pred_region
          %s1056 = sand.u32 %s274, 1
          %s1057 = scalar_lea.sflag [#allocation4], %s1056
          %s1058 = sand.u32 %s274, 1
          %s1059 = smul.addr %s1058, 8
          %s1060 = scalar_lea.vmem [#allocation13], %s1059
          %1061 = dma.done %s1057, 128
        $region100: #{tpu_custom_call.1} parent=95 // pred_fallthru
          _
      $region96: #{tpu_custom_call.1} parent=5 // pred_fallthru
        _
    $region6: #{tpu_custom_call.1} parent=1 // loop_footer
      %s28 = sadd.s32 1, %s24
    $region7: #{tpu_custom_call.1} parent=1 // loop_footer_branch
      %23 = sbr.rel target = $region3
    $region8: #{tpu_custom_call.1} parent=1 // loop_exit
      _
    %1062 = vsyncpa [#allocation3], 1
    %s1063 = scalar_lea.sflag [#allocation3], 1
    %1064 = vsyncpa %s1063, 1
    %1065 = vsyncpa [#allocation6], 1
    %1066 = vsyncpa [#allocation9], 1
    %1067 = vsyncpa [#allocation12], 1
    %1068 = vsyncpa [#allocation4], 1
    %s1069 = scalar_lea.sflag [#allocation4], 1
    %1070 = vsyncpa %s1069, 1

</llo_original>
